<compile_context>
chip_gen: v7x
topology: tpu7x:2x2x1
jax: 0.10.0
libtpu: 0.0.40
codegen_flags: <defaults>
</compile_context>

<pallas_src>
import functools

import jax
import jax.numpy as jnp
from jax import lax
from jax.experimental import pallas as pl
from jax.experimental.pallas import tpu as pltpu


def _round_up(x: int, m: int) -> int:
    return ((x + m - 1) // m) * m


def _ce_sum_kernel(logits_ref, target_ref, out_ref, *, n_rows: int, tm: int):
    # One (tm, C) logits tile + (tm, 1) targets -> one scalar partial sum,
    # written to [0, 0, 0] of a lane-dense (1, 8, 128) output block.
    x = logits_ref[...]                                   # native dtype, (tm, C)
    t = target_ref[...]                                   # (tm, 1) int32

    # Row-validity mask for the (possibly partial) last tile.  Applied with a
    # finite "minus infinity" BEFORE max/exp: masked rows get m = finfo.min and
    # xm = 0, so every intermediate stays finite and the final 0-mask is safe.
    row = pl.program_id(0) * tm + lax.broadcasted_iota(jnp.int32, (tm, 1), 0)
    row_valid = row < n_rows                              # (tm, 1) bool
    neg = jnp.finfo(x.dtype).min
    x_msk = jnp.where(row_valid, x, neg)                  # native dtype

    # Row max in native dtype (exact); single cast to f32 for the rest.
    m = jnp.max(x_msk, axis=-1, keepdims=True)            # (tm, 1)
    xm = x_msk.astype(jnp.float32) - m.astype(jnp.float32)  # (tm, C) f32

    # logits[i, target[i]] (relative to m) via a lane-index match — no gather.
    # Garbage targets on padded rows are harmless: xm == 0 there.
    col = lax.broadcasted_iota(jnp.int32, xm.shape, 1)
    tgt_rel = jnp.sum(jnp.where(col == t, xm, 0.0), axis=-1, keepdims=True)  # (tm, 1)
    lse_rel = jnp.log(jnp.sum(jnp.exp(xm), axis=-1, keepdims=True))          # (tm, 1)

    valid = row_valid.astype(jnp.float32)
    partial = jnp.sum((lse_rel - tgt_rel) * valid)        # scalar partial for this tile

    # Partial at [0,0,0], zeros elsewhere -> wrapper reduce is a contiguous jnp.sum.
    sub = lax.broadcasted_iota(jnp.int32, out_ref.shape, 1)
    lane = lax.broadcasted_iota(jnp.int32, out_ref.shape, 2)
    out_ref[...] = jnp.where((sub == 0) & (lane == 0), partial, 0.0)


def single_word_loss(logits: jax.Array, target: jax.Array) -> jax.Array:
    """CrossEntropyLoss(size_average=False)(logits, target): sum of per-row NLL."""
    N, C = logits.shape
    itemsize = jnp.dtype(logits.dtype).itemsize
    sublane = max(8, 32 // itemsize)          # 8 f32, 16 bf16, 32 int8/fp8
    c_lanes = _round_up(C, 128)               # VMEM footprint per row (lane packing)

    # Generation-aware VMEM budget (v5e/v6e: 128 MiB; v7x: 64 MiB per TC).
    try:
        vmem_bytes = int(pltpu.get_tpu_info().vmem_capacity_bytes)
    except Exception:  # interpret mode / unknown target
        vmem_bytes = 64 * 1024 * 1024

    # Per-row cost: 2 pipelined native-dtype input buffers + ~3 f32 temporaries
    # (masked x, x - m, exp/one-hot) live inside the kernel body.
    bytes_per_row = c_lanes * (2 * itemsize + 3 * 4)
    vmem_budget = vmem_bytes // 4             # headroom for outputs/sems/compiler scratch
    tm_cap = min(1024, max(sublane, vmem_budget // bytes_per_row))
    tm_cap = max(sublane, (tm_cap // sublane) * sublane)

    # Balance tiles (bounds last-tile waste) and keep >=2 tiles when N allows it
    # so both v7x TensorCores get work under dimension_semantics=("parallel",).
    num_tiles = pl.cdiv(N, tm_cap)
    if num_tiles == 1 and N > sublane:
        num_tiles = 2
    tm = _round_up(pl.cdiv(N, num_tiles), sublane)
    num_tiles = pl.cdiv(N, tm)

    target_2d = target.astype(jnp.int32).reshape(N, 1)    # metadata-only reshape

    # Explicit scoped-VMEM limit from the actual tile footprint.
    vmem_limit = (2 * tm * c_lanes * itemsize             # double-buffered logits tiles
                  + 2 * tm * 128 * 4                      # double-buffered target tiles
                  + 4 * tm * c_lanes * 4                  # in-kernel f32 temporaries
                  + (2 << 20))                            # outputs + slack
    vmem_limit = int(min(vmem_bytes, max(vmem_limit, 16 << 20)))

    kernel = functools.partial(_ce_sum_kernel, n_rows=N, tm=tm)

    partials = pl.pallas_call(
        kernel,
        out_shape=jax.ShapeDtypeStruct((num_tiles, 8, 128), jnp.float32),
        grid_spec=pltpu.PrefetchScalarGridSpec(
            num_scalar_prefetch=0,
            grid=(num_tiles,),
            in_specs=[
                pl.BlockSpec((tm, C), lambda i: (i, 0)),   # full class dim: no HBM pad
                pl.BlockSpec((tm, 1), lambda i: (i, 0)),
            ],
            out_specs=pl.BlockSpec((1, 8, 128), lambda i: (i, 0, 0)),
        ),
        compiler_params=pltpu.CompilerParams(
            # Per-tile partials are independent -> shardable across TCs (v7x megacore).
            dimension_semantics=("parallel",),
            vmem_limit_bytes=vmem_limit,
        ),
        cost_estimate=pl.CostEstimate(
            flops=5 * N * C,
            transcendentals=N * C,
            bytes_accessed=N * C * itemsize + N * 4 + num_tiles * 8 * 128 * 4,
        ),
    )(logits, target_2d)

    # Contiguous reduce over the small partials buffer (only [i,0,0] is non-zero).
    return jnp.sum(partials)


if __name__ == "__main__":
    key = jax.random.PRNGKey(0)
    k_logits, k_target = jax.random.split(key)

    N, C = 8, 32  # small batch of 8 examples, 32-way classification
    logits = jax.random.normal(k_logits, (N, C), dtype=jnp.float32)
    target = jax.random.randint(k_target, (N,), 0, C, dtype=jnp.int32)

    loss = single_word_loss(logits, target)
    jax.block_until_ready(loss)

    # Pure-JAX reference check (sum-reduced cross entropy).
    lse_ref = jax.scipy.special.logsumexp(logits, axis=-1)
    nll_ref = lse_ref - logits[jnp.arange(N), target]
    ref = jnp.sum(nll_ref)

    assert jnp.allclose(loss, ref, rtol=1e-5, atol=1e-5), (loss, ref)
    print("KERNEL_OK")
</pallas_src>

<mosaic_0001>
module attributes {stable_mosaic.version = 11 : i64} {
  func.func @_ce_sum_kernel(%arg0: i32, %arg1: memref<8x32xf32, #tpu.memory_space<vmem>>, %arg2: memref<8x1xi32, #tpu.memory_space<vmem>>, %arg3: memref<1x8x128xf32, #tpu.memory_space<vmem>>) attributes {dimension_semantics = [#tpu.dimension_semantics<parallel>], iteration_bounds = array<i64: 1>, scalar_prefetch = 0 : i64, scratch_operands = 0 : i64, tpu.core_type = #tpu.core_type<tc>, window_params = [{transform_indices = @transform_0, window_bounds = array<i64: 8, 32>}, {transform_indices = @transform_1, window_bounds = array<i64: 8, 1>}, {transform_indices = @transform_2, window_bounds = array<i64: 1, 8, 128>}]} {
    %c0 = arith.constant 0 : index
    %c0_0 = arith.constant 0 : index
    %0 = vector.load %arg1[%c0, %c0_0] : memref<8x32xf32, #tpu.memory_space<vmem>>, vector<8x32xf32>
    %c0_1 = arith.constant 0 : index
    %c0_2 = arith.constant 0 : index
    %1 = vector.load %arg2[%c0_1, %c0_2] : memref<8x1xi32, #tpu.memory_space<vmem>>, vector<8x1xi32>
    %c8_i32 = arith.constant 8 : i32
    %2 = arith.muli %arg0, %c8_i32 : i32
    %3 = tpu.iota {dimensions = array<i32: 0>} : vector<8x1xi32>
    %4 = vector.broadcast %2 : i32 to vector<8x1xi32>
    %5 = arith.addi %4, %3 : vector<8x1xi32>
    %c8_i32_3 = arith.constant 8 : i32
    %6 = vector.broadcast %c8_i32_3 : i32 to vector<8x1xi32>
    %7 = arith.cmpi slt, %5, %6 : vector<8x1xi32>
    %cst = arith.constant -3.40282347E+38 : f32
    %8 = vector.shape_cast %7 : vector<8x1xi1> to vector<8x1xi1>
    %9 = vector.broadcast %8 : vector<8x1xi1> to vector<8x32xi1>
    %10 = vector.broadcast %cst : f32 to vector<8x32xf32>
    %11 = arith.select %9, %0, %10 : vector<8x32xi1>, vector<8x32xf32>
    %cst_4 = arith.constant dense<0xFF800000> : vector<8xf32>
    %12 = vector.multi_reduction <maximumf>, %11, %cst_4 [1] : vector<8x32xf32> to vector<8xf32>
    %13 = vector.shape_cast %12 : vector<8xf32> to vector<8x1xf32>
    %14 = vector.broadcast %13 : vector<8x1xf32> to vector<8x32xf32>
    %15 = arith.subf %11, %14 : vector<8x32xf32>
    %16 = tpu.iota {dimensions = array<i32: 1>} : vector<8x32xi32>
    %17 = vector.broadcast %1 : vector<8x1xi32> to vector<8x32xi32>
    %18 = arith.cmpi eq, %16, %17 : vector<8x32xi32>
    %cst_5 = arith.constant 0.000000e+00 : f32
    %19 = vector.broadcast %cst_5 : f32 to vector<8x32xf32>
    %20 = arith.select %18, %15, %19 : vector<8x32xi1>, vector<8x32xf32>
    %cst_6 = arith.constant dense<0.000000e+00> : vector<8xf32>
    %21 = vector.multi_reduction <add>, %20, %cst_6 [1] : vector<8x32xf32> to vector<8xf32>
    %22 = vector.shape_cast %21 : vector<8xf32> to vector<8x1xf32>
    %23 = math.exp %15 : vector<8x32xf32>
    %cst_7 = arith.constant dense<0.000000e+00> : vector<8xf32>
    %24 = vector.multi_reduction <add>, %23, %cst_7 [1] : vector<8x32xf32> to vector<8xf32>
    %25 = vector.shape_cast %24 : vector<8xf32> to vector<8x1xf32>
    %26 = math.log %25 : vector<8x1xf32>
    %27 = arith.extui %7 : vector<8x1xi1> to vector<8x1xi32>
    %28 = arith.sitofp %27 : vector<8x1xi32> to vector<8x1xf32>
    %29 = arith.subf %26, %22 : vector<8x1xf32>
    %30 = arith.mulf %29, %28 : vector<8x1xf32>
    %31 = vector.shape_cast %30 : vector<8x1xf32> to vector<1x8x1xf32>
    %cst_8 = arith.constant dense<0.000000e+00> : vector<1xf32>
    %32 = vector.multi_reduction <add>, %31, %cst_8 [1, 2] : vector<1x8x1xf32> to vector<1xf32>
    %33 = vector.shape_cast %32 : vector<1xf32> to vector<1x1x1xf32>
    %34 = vector.extract %33[0, 0, 0] : f32 from vector<1x1x1xf32>
    %35 = tpu.iota {dimensions = array<i32: 1>} : vector<1x8x128xi32>
    %36 = tpu.iota {dimensions = array<i32: 2>} : vector<1x8x128xi32>
    %c0_i32 = arith.constant 0 : i32
    %37 = vector.broadcast %c0_i32 : i32 to vector<1x8x128xi32>
    %38 = arith.cmpi eq, %35, %37 : vector<1x8x128xi32>
    %c0_i32_9 = arith.constant 0 : i32
    %39 = vector.broadcast %c0_i32_9 : i32 to vector<1x8x128xi32>
    %40 = arith.cmpi eq, %36, %39 : vector<1x8x128xi32>
    %41 = arith.andi %38, %40 : vector<1x8x128xi1>
    %cst_10 = arith.constant 0.000000e+00 : f32
    %42 = vector.broadcast %34 : f32 to vector<1x8x128xf32>
    %43 = vector.broadcast %cst_10 : f32 to vector<1x8x128xf32>
    %44 = arith.select %41, %42, %43 : vector<1x8x128xi1>, vector<1x8x128xf32>
    %c0_11 = arith.constant 0 : index
    %c0_12 = arith.constant 0 : index
    %c0_13 = arith.constant 0 : index
    %45 = vector.load %arg3[%c0_11, %c0_12, %c0_13] : memref<1x8x128xf32, #tpu.memory_space<vmem>>, vector<1x8x128xf32>
    tpu.vector_store %arg3[%c0_11, %c0_12, %c0_13], %44 {strides = array<i32>} : memref<1x8x128xf32, #tpu.memory_space<vmem>>, vector<1x8x128xf32>,
    return
  }
  func.func @transform_0(%arg0: i32) -> (i32, i32) {
    %c0_i32 = arith.constant 0 : i32
    %c0_i32_0 = arith.constant 0 : i32
    return %arg0, %c0_i32 : i32, i32
  }
  func.func @transform_1(%arg0: i32) -> (i32, i32) {
    %c0_i32 = arith.constant 0 : i32
    %c0_i32_0 = arith.constant 0 : i32
    return %arg0, %c0_i32 : i32, i32
  }
  func.func @transform_2(%arg0: i32) -> (i32, i32, i32) {
    %c0_i32 = arith.constant 0 : i32
    %c0_i32_0 = arith.constant 0 : i32
    %c0_i32_1 = arith.constant 0 : i32
    return %arg0, %c0_i32, %c0_i32_0 : i32, i32, i32
  }
}

</mosaic_0001>

<llo_original>
// kernel: tpu_custom_call.1
$region0: #{tpu_custom_call.1}
  #allocation0 [shape = 'u32[]', space=smem, size = 0x4, offset = 0x4, fixed_abs, tag = 'smem constant byte address 0x4 - core index']
  #allocation1 [shape = 'u32[144,128]{1,0:T(1,128)}', space=vmem, size = 0x12000, scoped, tag = 'internal scratch']
  %s0 = inlined_call_operand.vmem [shape: f32[8,32], index: 0, kind: input, shape index: {}]
  %s1 = inlined_call_operand.vmem [shape: s32[8,1], index: 1, kind: input, shape index: {}]
  %s2 = inlined_call_operand.hbm [shape: f32[1,8,128], index: 2, kind: output, shape index: {}]
  %s3 = sld [smem:[#allocation0]]
  $region18: #{tpu_custom_call.1} parent=0
    _
  %s5 = ssub.s32 1, %s3
  %s6 = scalar_select 0, %s5, %s3
  $region1: #{tpu_custom_call.1} parent=0
    #allocation2 [shape = 'u8[4096]{0}', space=vmem, size = 0x1000, scoped, tag = 'output window, operand 0, single buffered']
    #allocation3 [shape = 's32[1]{0}', space=sflag, size = 0x4, scoped, tag = 'scoped memory for tpu_custom_call.1']
    %7 = vsyncpa [#allocation3], 0
    // Predicated region
    $region2: #{tpu_custom_call.1} parent=1 // pred_check
      _
    $region3: #{tpu_custom_call.1} parent=1 // pred_check_branch
      %9 = sbr.rel (0) target = $region5
    $region4: #{tpu_custom_call.1} parent=1 // pred_region
      _
    $region5: #{tpu_custom_call.1} parent=1 // pred_fallthru
      _
    // Predicated region
    $region6: #{tpu_custom_call.1} parent=1 // pred_check
      _
    $region7: #{tpu_custom_call.1} parent=1 // pred_check_branch
      %11 = sbr.rel (0) target = $region9
    $region8: #{tpu_custom_call.1} parent=1 // pred_region
      _
    $region9: #{tpu_custom_call.1} parent=1 // pred_fallthru
      _
    %v12 = vld [vmem:[%s0] sm:$0xff]
    %v13 = vld [vmem:[%s1] sm:$0xff]
    %s14 = smul.u32 0, 8
    %v15 = vlaneseq
    %v16 = vshrl.u32 %v15, 7
    %v17 = vstv %s14
    %v18 = vadd.s32 %v17, %v16
    %vm19 = vcmp.lt.s32.totalorder %v18, 8
    %v20 = vsel %vm19, 1, 0
    %vm21 = vcmp.eq.s32.totalorder %v20, 1
    %v22 = vsel %vm21, %v12, -3.4028235e+38
    %vm23 = vcmask 261120
    %v24 = vsel %vm23, %v22, -inf
    %25 = vmax.xlane.f32.xlu0 %v24
    %v26 = vpop.xlane.xlu0 %25
    %v27 = vsub.f32 %v22, %v26
    %v28 = vlaneseq
    %v29 = vand.u32 %v28, 127
    %30 = vset.pattern.permute.xlu0 0
    %31 = vperm.xlu0 %30, %v13
    %v32 = vpop.permute.xlu0 %31
    %vm33 = vcmp.eq.s32.totalorder %v29, %v32
    %v34 = vsel %vm33, %v27, 0.0
    %v35 = vsel %vm23, %v34, 0.0
    %36 = vadd.xlane.f32.xlu0 %v35
    %v37 = vpop.xlane.xlu0 %36
    %v38 = vmul.f32 %v27, 1.442695
    %v39 = vpow.pop %v38
    %v40 = vsel %vm23, %v39, 0.0
    %41 = vadd.xlane.f32.xlu0 %v40
    %v42 = vpop.xlane.xlu0 %41
    %v43 = vlog2.pop %v42
    %v44 = vmul.f32 %v43, 0.6931472
    %v45 = vcvt.s32.f32 %v20
    %v46 = vsub.f32 %v44, %v37
    %v47 = vmul.f32 %v46, %v45
    %vm48 = vcmask 7168
    %v49 = vsel %vm48, %v47, 0.0
    %50 = vadd.xlane.f32.xlu0 %v49
    %v51 = vpop.xlane.xlu0 %50
    %v52 = vrot.slane %v51, 4
    %v53 = vadd.f32 %v51, %v52
    %v54 = vrot.slane %v53, 2
    %v55 = vadd.f32 %v53, %v54
    %v56 = vrot.slane %v55, 1
    %v57 = vadd.f32 %v55, %v56
    %s58 = vtos %v57
    %vm59 = vcmp.eq.s32.totalorder %v16, 0
    %vm60 = vcmp.eq.s32.totalorder %v29, 0
    %vm61 = vmand %vm59, %vm60
    %v62 = vstv %s58
    %v63 = vsel %vm61, %v62, 0.0
    %64 = vst [vmem:[#allocation2] sm:$0xff] %v63
    // Predicated region
    $region10: #{tpu_custom_call.1} parent=1 // pred_check
      _
    $region11: #{tpu_custom_call.1} parent=1 // pred_check_branch
      %66 = sbr.rel (0) target = $region13
    $region12: #{tpu_custom_call.1} parent=1 // pred_region
      %s68 = ssub.s32 128, 128
      %69 = vsyncadd [#allocation3], %s68
      %s71 = sshll.u32 [#allocation2], 4
      %s72 = int_to_ptr.vmem [resolvable:$true] %s71
      %74 = dma.vmem_to_hbm [thread:$0]  %s72, 128, %s2, [#allocation3]
    $region13: #{tpu_custom_call.1} parent=1 // pred_fallthru
      _
    // Predicated region
    $region14: #{tpu_custom_call.1} parent=1 // pred_check
      _
    $region15: #{tpu_custom_call.1} parent=1 // pred_check_branch
      %76 = sbr.rel (0) target = $region17
    $region16: #{tpu_custom_call.1} parent=1 // pred_region
      %77 = dma.done [#allocation3], 128
    $region17: #{tpu_custom_call.1} parent=1 // pred_fallthru
      _
    %78 = vsyncpa [#allocation3], 1

</llo_original>
